<compile_context>
chip_gen: v7x
topology: tpu7x:2x2x1
jax: 0.10.0
libtpu: 0.0.40
codegen_flags: <defaults>
</compile_context>

<pallas_src>
import math
import re

import jax
import jax.numpy as jnp
from jax import lax
from jax.experimental import pallas as pl
from jax.experimental.pallas import tpu as pltpu


# ----------------------------- hardware probing -----------------------------

def _tpu_generation() -> int:
    try:
        kind = jax.devices()[0].device_kind
    except Exception:
        return 0
    m = re.search(r"(\d+)", kind)
    return int(m.group(1)) if m else 0


def _vmem_capacity_bytes(gen: int) -> int:
    try:
        cap = getattr(pltpu.get_tpu_info(), "vmem_capacity_bytes", None)
        if cap:
            return int(cap)
    except Exception:
        pass
    return (64 << 20) if gen >= 7 else (128 << 20)


# ----------------------------- shared math -----------------------------

def _uhg_linear(x, w_ref, b_ref):
    # F.linear (weight pre-transposed to (in,out), pre-cast to bf16) then
    # project_to_uhg: y / (||y||_2 + 1e-8).  MXU in bf16, f32 accumulate.
    y = jnp.dot(x.astype(jnp.bfloat16), w_ref[...],
                preferred_element_type=jnp.float32) + b_ref[...]
    n = jnp.sqrt(jnp.sum(y * y, axis=-1, keepdims=True))
    return y * pl.reciprocal(n + 1e-8, approx=True)


# ----------------------------- kernel 1: K/V projection -----------------------------

def _make_prep_kernel(batch: int):
    B = batch

    def kernel(src_ref, kw_ref, kb_ref, vw_ref, vb_ref, x_ref, k_ref, v_ref):
        # src_ref: (ts, B, D) f32 in the PyTorch (seq, batch, d) layout.
        # Outputs batch-major: x (B, ts, D) f32, k/v (B, ts, D) bf16.
        for b in range(B):
            xb = src_ref[:, b, :]                                   # (ts, D)
            x_ref[b] = xb
            k_ref[b] = _uhg_linear(xb, kw_ref, kb_ref).astype(jnp.bfloat16)
            v_ref[b] = _uhg_linear(xb, vw_ref, vb_ref).astype(jnp.bfloat16)

    return kernel


# ----------------------------- kernel 2: attention + FFN -----------------------------

def _make_main_kernel(num_heads: int, ln_eps: float, tk: int, exp_dtype):
    H = num_heads

    def _layer_norm(x, g_ref, b_ref):
        d = x.shape[-1]
        mean = jnp.mean(x, axis=-1, keepdims=True)
        diff = x - mean
        var = jnp.sum(diff * diff, axis=-1, keepdims=True) * (1.0 / (d - 1))  # unbiased
        return diff * lax.rsqrt(var + ln_eps) * g_ref[...] + b_ref[...]

    def kernel(x_ref, k_ref, v_ref,
               qw_ref, qb_ref, wo_ref, ob_ref,
               w1_ref, b1_ref, w2_ref, b2_ref,
               g1_ref, be1_ref, g2_ref, be2_ref,
               out_ref):
        x = x_ref[0]                                # (tq, D)  query-row tile (f32)
        tq, D = x.shape
        S = k_ref.shape[1]
        hd = D // H
        n_kc = S // tk

        def split_heads(t):
            return jnp.stack([t[:, h * hd:(h + 1) * hd] for h in range(H)], axis=0)

        # ---- Q projection (only tq rows; K/V precomputed by the prep kernel) ----
        q = _uhg_linear(x, qw_ref, qb_ref)                       # (tq, D) f32
        qh_bf = split_heads(q).astype(jnp.bfloat16)              # (H, tq, hd)
        qh_f = qh_bf.astype(jnp.float32)                         # bf16-rounded -> q2/k2/qk consistent
        q2 = jnp.sum(qh_f * qh_f, axis=-1, keepdims=True)        # (H, tq, 1)

        # ---- attention: stream KV in tk-row chunks (bounded VMEM temporaries) ----
        def kv_step(c, carry):
            ctx_acc, den_acc = carry
            start = pl.multiple_of(c * tk, tk)
            kc = k_ref[0, pl.ds(start, tk), :]                    # (tk, D) bf16
            vc = v_ref[0, pl.ds(start, tk), :]                    # (tk, D) bf16
            khc = split_heads(kc)                                 # (H, tk, hd)
            vhc = split_heads(vc)
            khf = khc.astype(jnp.float32)
            k2 = jnp.sum(khf * khf, axis=-1)[:, None, :]          # (H, 1, tk)
            qk = jnp.einsum('hqd,hkd->hqk', qh_bf, khc,
                            preferred_element_type=jnp.float32)   # (H, tq, tk)
            d2 = jnp.maximum(q2 + k2 - 2.0 * qk, 0.0)
            # scores = -dist <= 0  =>  exp in (0, 1]: no max-subtraction needed.
            p = jnp.exp((-jnp.sqrt(d2)).astype(exp_dtype))
            den_acc = den_acc + jnp.sum(p, axis=-1, keepdims=True).astype(jnp.float32)
            ctx_acc = ctx_acc + jnp.einsum('hqk,hkd->hqd',
                                           p.astype(jnp.bfloat16), vhc,
                                           preferred_element_type=jnp.float32)
            return ctx_acc, den_acc

        ctx0 = jnp.zeros((H, tq, hd), jnp.float32)
        den0 = jnp.zeros((H, tq, 1), jnp.float32)
        ctx, den = lax.fori_loop(0, n_kc, kv_step, (ctx0, den0))
        ctx = (ctx * pl.reciprocal(den, approx=True)).astype(jnp.bfloat16)

        # out-projection: concat_h(ctx_h) @ W_o == sum_h ctx_h @ W_o[h*hd:(h+1)*hd, :]
        # (no lane-misaligned per-head scratch stores)
        acc = jnp.dot(ctx[0], wo_ref[0], preferred_element_type=jnp.float32)
        for h in range(1, H):
            acc = acc + jnp.dot(ctx[h], wo_ref[h], preferred_element_type=jnp.float32)
        attn = acc + ob_ref[...]
        n = jnp.sqrt(jnp.sum(attn * attn, axis=-1, keepdims=True))
        attn = attn * pl.reciprocal(n + 1e-8, approx=True)        # project_to_uhg

        # ---- residual + norm1 (dropout1 = identity, eval) ----
        y = _layer_norm(x + attn, g1_ref, be1_ref)

        # ---- feed-forward: linear1 -> relu -> linear2 ----
        h1 = jnp.maximum(_uhg_linear(y, w1_ref, b1_ref), 0.0)
        ff = _uhg_linear(h1, w2_ref, b2_ref)

        # ---- residual + norm2 (dropout2 = identity) ----
        y = _layer_norm(y + ff, g2_ref, be2_ref)

        # ---- final division by torch.norm (no eps: parity with the reference) ----
        y = y * lax.rsqrt(jnp.sum(y * y, axis=-1, keepdims=True))

        out_ref[0] = y

    return kernel


# ----------------------------- parameters -----------------------------

def init_params(key, d_model: int, dim_feedforward: int):
    """Deterministic init mirroring UHGLinear.reset_parameters / UHGLayerNorm."""
    def lin(k, fan_in, fan_out):
        k1, k2 = jax.random.split(k)
        bound = 1.0 / math.sqrt(fan_in)       # kaiming_uniform(a=sqrt(5)) bound
        # stored already transposed: (in_features, out_features)
        w = jax.random.uniform(k1, (fan_in, fan_out), jnp.float32, -bound, bound)
        b = jax.random.uniform(k2, (1, fan_out), jnp.float32, -bound, bound)
        return w, b

    keys = jax.random.split(key, 6)
    qw, qb = lin(keys[0], d_model, d_model)
    kw, kb = lin(keys[1], d_model, d_model)
    vw, vb = lin(keys[2], d_model, d_model)
    ow, ob = lin(keys[3], d_model, d_model)
    w1, b1 = lin(keys[4], d_model, dim_feedforward)
    w2, b2 = lin(keys[5], dim_feedforward, d_model)
    g1 = jnp.ones((1, d_model), jnp.float32)
    be1 = jnp.zeros((1, d_model), jnp.float32)
    g2 = jnp.ones((1, d_model), jnp.float32)
    be2 = jnp.zeros((1, d_model), jnp.float32)
    return [qw, qb, kw, kb, vw, vb, ow, ob, w1, b1, w2, b2, g1, be1, g2, be2]


_WEIGHT_IDX = (0, 2, 4, 6, 8, 10)     # qw, kw, vw, ow, w1, w2 (matmul weights -> bf16)


# ----------------------------- tiling / VMEM heuristics -----------------------------

def _divisor_tile(n: int, max_tile: int) -> int:
    for c in (512, 256, 128, 64, 32, 16, 8):
        if c <= max_tile and c <= n and n % c == 0:
            return c
    return n                                   # n < 8 or not a multiple of 8


def _main_vmem_estimate(S, D, F, H, tq, tk, kv_bufs):
    f32, bf16 = 4, 2
    weights = bf16 * (2 * D * D + 2 * D * F) + f32 * (8 * D + F)
    kv_blocks = kv_bufs * 2 * S * D * bf16           # bf16 K + V blocks
    io = 2 * 2 * tq * D * f32                        # x tile in + out tile, double-buffered
    heads = tq * D * (2 * f32 + bf16)                # q, qh_f32, qh_bf16
    chunk = 2 * tk * D * (bf16 + f32)                # k/v chunk + f32 upcast
    scores = 3 * H * tq * tk * f32                   # qk / d2 / p live copies (upper bound)
    acc = 2 * tq * D * f32                           # ctx accumulator + attn
    ffn = tq * F * (f32 + bf16) + 4 * tq * D * f32
    return weights + kv_blocks + io + heads + chunk + scores + acc + ffn


def _pick_tq(S, fits):
    cands = [c for c in (256, 128, 64, 32, 16, 8) if c <= S and S % c == 0]
    for c in cands:
        if fits(c):
            return c
    return cands[-1] if cands else S


# ----------------------------- public wrapper -----------------------------

def uhg_transformer_forward(src, params, nhead: int, layer_norm_eps: float = 1e-5):
    """src: (seq_len, batch, d_model) -> (seq_len, batch, d_model). Eval-mode forward."""
    src = src.astype(jnp.float32)
    S, B, D = src.shape
    H = nhead
    hd = D // H
    F = params[8].shape[1]                                   # dim_feedforward

    gen = _tpu_generation()
    cap = _vmem_capacity_bytes(gen)
    budget = int(0.8 * cap)
    kv_bufs = 1 if gen >= 7 else 2                           # single-buffer full K/V block on v7x
    exp_dtype = jnp.bfloat16 if gen >= 6 else jnp.float32    # v5e has no bf16 EUP/VPU

    # bf16 matmul weights for the MXU; biases / LN params stay f32.
    params = [p.astype(jnp.bfloat16) if i in _WEIGHT_IDX else p.astype(jnp.float32)
              for i, p in enumerate(params)]
    qw, qb, kw, kb, vw, vb, ow, ob, w1, b1, w2, b2, g1, be1, g2, be2 = params
    ow_h = ow.reshape(H, hd, D)                              # per-head row blocks of W_o

    # ---------------- kernel 1: K/V projection + batch-major copy of x ----------------
    ts = _divisor_tile(S, 256)
    n_st = S // ts

    def _const_prep(shape):
        return pl.BlockSpec(shape, lambda si: (0, 0), pipeline_mode=pl.Buffered(1))

    prep_est = (2 * ts * B * D * 4 + 2 * 3 * B * ts * D * 4
                + 2 * (2 * D * D + 2 * D) * 4 + 6 * ts * D * 4)
    prep_vmem = max(32 << 20, min(budget, prep_est + (8 << 20)))

    x_bm, k_bm, v_bm = pl.pallas_call(
        _make_prep_kernel(B),
        out_shape=(jax.ShapeDtypeStruct((B, S, D), jnp.float32),
                   jax.ShapeDtypeStruct((B, S, D), jnp.bfloat16),
                   jax.ShapeDtypeStruct((B, S, D), jnp.bfloat16)),
        grid=(n_st,),
        in_specs=[pl.BlockSpec((ts, B, D), lambda si: (si, 0, 0)),
                  _const_prep(kw.shape), _const_prep(kb.shape),
                  _const_prep(vw.shape), _const_prep(vb.shape)],
        out_specs=(pl.BlockSpec((B, ts, D), lambda si: (0, si, 0)),
                   pl.BlockSpec((B, ts, D), lambda si: (0, si, 0)),
                   pl.BlockSpec((B, ts, D), lambda si: (0, si, 0))),
        compiler_params=pltpu.CompilerParams(
            dimension_semantics=("parallel",),
            vmem_limit_bytes=int(prep_vmem)),
    )(src, kw, kb, vw, vb)

    # ---------------- kernel 2: attention + FFN, per (batch, query tile) ----------------
    tk = _divisor_tile(S, 256 if gen >= 7 else 512)

    def fits(tq_cand):
        return _main_vmem_estimate(S, D, F, H, tq_cand, tk, kv_bufs) <= budget

    tq = _pick_tq(S, fits)
    n_qt = S // tq

    est = _main_vmem_estimate(S, D, F, H, tq, tk, kv_bufs)
    main_vmem = max(32 << 20, min(int(0.85 * cap), est + (16 << 20)))

    kernel = _make_main_kernel(H, layer_norm_eps, tk, exp_dtype)

    def _const(shape):
        nd = len(shape)
        return pl.BlockSpec(shape, lambda b, qi, _n=nd: (0,) * _n,
                            pipeline_mode=pl.Buffered(1))

    def _kv_spec():
        if gen >= 7:
            return pl.BlockSpec((1, S, D), lambda b, qi: (b, 0, 0),
                                pipeline_mode=pl.Buffered(1))
        return pl.BlockSpec((1, S, D), lambda b, qi: (b, 0, 0))

    in_specs = [pl.BlockSpec((1, tq, D), lambda b, qi: (b, qi, 0)),   # x query tile (+residual)
                _kv_spec(), _kv_spec(),                               # precomputed bf16 K, V
                _const(qw.shape), _const(qb.shape),
                _const(ow_h.shape), _const(ob.shape),
                _const(w1.shape), _const(b1.shape),
                _const(w2.shape), _const(b2.shape),
                _const(g1.shape), _const(be1.shape),
                _const(g2.shape), _const(be2.shape)]

    out = pl.pallas_call(
        kernel,
        out_shape=jax.ShapeDtypeStruct((B, S, D), jnp.float32),
        grid=(B, n_qt),
        in_specs=in_specs,
        out_specs=pl.BlockSpec((1, tq, D), lambda b, qi: (b, qi, 0)),
        compiler_params=pltpu.CompilerParams(
            dimension_semantics=("parallel", "parallel"),
            vmem_limit_bytes=int(main_vmem)),
    )(x_bm, k_bm, v_bm, qw, qb, ow_h, ob, w1, b1, w2, b2, g1, be1, g2, be2)

    return jnp.transpose(out, (1, 0, 2))                    # back to (S, B, D)


if __name__ == "__main__":
    seq_len, batch, d_model, nhead, dim_ff = 8, 2, 32, 4, 64

    key = jax.random.PRNGKey(0)
    k_src, k_par = jax.random.split(key)
    src = jax.random.normal(k_src, (seq_len, batch, d_model), jnp.float32)
    params = init_params(k_par, d_model, dim_ff)

    out = uhg_transformer_forward(src, params, nhead)
    out = jax.block_until_ready(out)

    assert out.shape == (seq_len, batch, d_model)
    assert bool(jnp.all(jnp.isfinite(out)))
    print("KERNEL_OK")
</pallas_src>

<mosaic_0001>
module attributes {stable_mosaic.version = 11 : i64} {
  func.func @kernel(%arg0: i32, %arg1: memref<8x2x32xf32, #tpu.memory_space<vmem>>, %arg2: memref<32x32xbf16, #tpu.memory_space<vmem>>, %arg3: memref<1x32xf32, #tpu.memory_space<vmem>>, %arg4: memref<32x32xbf16, #tpu.memory_space<vmem>>, %arg5: memref<1x32xf32, #tpu.memory_space<vmem>>, %arg6: memref<2x8x32xf32, #tpu.memory_space<vmem>>, %arg7: memref<2x8x32xbf16, #tpu.memory_space<vmem>>, %arg8: memref<2x8x32xbf16, #tpu.memory_space<vmem>>) attributes {dimension_semantics = [#tpu.dimension_semantics<parallel>], iteration_bounds = array<i64: 1>, scalar_prefetch = 0 : i64, scratch_operands = 0 : i64, tpu.core_type = #tpu.core_type<tc>, window_params = [{transform_indices = @transform_0, window_bounds = array<i64: 8, 2, 32>}, {pipeline_mode = #tpu.pipeline_mode<synchronous>, transform_indices = @transform_1, window_bounds = array<i64: 32, 32>}, {pipeline_mode = #tpu.pipeline_mode<synchronous>, transform_indices = @transform_2, window_bounds = array<i64: 1, 32>}, {pipeline_mode = #tpu.pipeline_mode<synchronous>, transform_indices = @transform_3, window_bounds = array<i64: 32, 32>}, {pipeline_mode = #tpu.pipeline_mode<synchronous>, transform_indices = @transform_4, window_bounds = array<i64: 1, 32>}, {transform_indices = @transform_5, window_bounds = array<i64: 2, 8, 32>}, {transform_indices = @transform_6, window_bounds = array<i64: 2, 8, 32>}, {transform_indices = @transform_7, window_bounds = array<i64: 2, 8, 32>}]} {
    %c0 = arith.constant 0 : index
    %c0_0 = arith.constant 0 : index
    %c0_1 = arith.constant 0 : index
    %0 = vector.load %arg1[%c0, %c0_0, %c0_1] : memref<8x2x32xf32, #tpu.memory_space<vmem>>, vector<8x1x32xf32>
    %1 = vector.shape_cast %0 : vector<8x1x32xf32> to vector<8x32xf32>
    %c0_2 = arith.constant 0 : index
    %c0_3 = arith.constant 0 : index
    %c0_4 = arith.constant 0 : index
    %2 = vector.load %arg6[%c0_2, %c0_3, %c0_4] : memref<2x8x32xf32, #tpu.memory_space<vmem>>, vector<1x8x32xf32>
    %3 = vector.shape_cast %2 : vector<1x8x32xf32> to vector<8x32xf32>
    %4 = vector.shape_cast %1 : vector<8x32xf32> to vector<1x8x32xf32>
    tpu.vector_store %arg6[%c0_2, %c0_3, %c0_4], %4 {strides = array<i32>} : memref<2x8x32xf32, #tpu.memory_space<vmem>>, vector<1x8x32xf32>,
    %5 = arith.truncf %1 : vector<8x32xf32> to vector<8x32xbf16>
    %c0_5 = arith.constant 0 : index
    %c0_6 = arith.constant 0 : index
    %6 = vector.load %arg2[%c0_5, %c0_6] : memref<32x32xbf16, #tpu.memory_space<vmem>>, vector<32x32xbf16>
    %cst = arith.constant dense<0.000000e+00> : vector<8x32xf32>
    %7 = tpu.matmul %5, %6, %cst {dimension_numbers = #tpu.dot_dimension_numbers<[1], [0], [0], [1], [0, 0, 1, 1], [], []>} : vector<8x32xbf16>, vector<32x32xbf16>, vector<8x32xf32> -> vector<8x32xf32>
    %c0_7 = arith.constant 0 : index
    %c0_8 = arith.constant 0 : index
    %8 = vector.load %arg3[%c0_7, %c0_8] : memref<1x32xf32, #tpu.memory_space<vmem>>, vector<1x32xf32>
    %9 = vector.broadcast %8 : vector<1x32xf32> to vector<8x32xf32>
    %10 = arith.addf %7, %9 : vector<8x32xf32>
    %11 = arith.mulf %10, %10 : vector<8x32xf32>
    %cst_9 = arith.constant dense<0.000000e+00> : vector<8xf32>
    %12 = vector.multi_reduction <add>, %11, %cst_9 [1] : vector<8x32xf32> to vector<8xf32>
    %13 = vector.shape_cast %12 : vector<8xf32> to vector<8x1xf32>
    %14 = math.sqrt %13 : vector<8x1xf32>
    %cst_10 = arith.constant 9.99999993E-9 : f32
    %15 = vector.broadcast %cst_10 : f32 to vector<8x1xf32>
    %16 = arith.addf %14, %15 : vector<8x1xf32>
    %17 = tpu.reciprocal %16 {approx = true} : vector<8x1xf32> -> vector<8x1xf32>
    %18 = vector.broadcast %17 : vector<8x1xf32> to vector<8x32xf32>
    %19 = arith.mulf %10, %18 : vector<8x32xf32>
    %20 = arith.truncf %19 : vector<8x32xf32> to vector<8x32xbf16>
    %c0_11 = arith.constant 0 : index
    %c0_12 = arith.constant 0 : index
    %c0_13 = arith.constant 0 : index
    %21 = vector.load %arg7[%c0_11, %c0_12, %c0_13] : memref<2x8x32xbf16, #tpu.memory_space<vmem>>, vector<1x8x32xbf16>
    %22 = vector.shape_cast %21 : vector<1x8x32xbf16> to vector<8x32xbf16>
    %23 = vector.shape_cast %20 : vector<8x32xbf16> to vector<1x8x32xbf16>
    tpu.vector_store %arg7[%c0_11, %c0_12, %c0_13], %23 {strides = array<i32>} : memref<2x8x32xbf16, #tpu.memory_space<vmem>>, vector<1x8x32xbf16>,
    %24 = arith.truncf %1 : vector<8x32xf32> to vector<8x32xbf16>
    %c0_14 = arith.constant 0 : index
    %c0_15 = arith.constant 0 : index
    %25 = vector.load %arg4[%c0_14, %c0_15] : memref<32x32xbf16, #tpu.memory_space<vmem>>, vector<32x32xbf16>
    %cst_16 = arith.constant dense<0.000000e+00> : vector<8x32xf32>
    %26 = tpu.matmul %24, %25, %cst_16 {dimension_numbers = #tpu.dot_dimension_numbers<[1], [0], [0], [1], [0, 0, 1, 1], [], []>} : vector<8x32xbf16>, vector<32x32xbf16>, vector<8x32xf32> -> vector<8x32xf32>
    %c0_17 = arith.constant 0 : index
    %c0_18 = arith.constant 0 : index
    %27 = vector.load %arg5[%c0_17, %c0_18] : memref<1x32xf32, #tpu.memory_space<vmem>>, vector<1x32xf32>
    %28 = vector.broadcast %27 : vector<1x32xf32> to vector<8x32xf32>
    %29 = arith.addf %26, %28 : vector<8x32xf32>
    %30 = arith.mulf %29, %29 : vector<8x32xf32>
    %cst_19 = arith.constant dense<0.000000e+00> : vector<8xf32>
    %31 = vector.multi_reduction <add>, %30, %cst_19 [1] : vector<8x32xf32> to vector<8xf32>
    %32 = vector.shape_cast %31 : vector<8xf32> to vector<8x1xf32>
    %33 = math.sqrt %32 : vector<8x1xf32>
    %cst_20 = arith.constant 9.99999993E-9 : f32
    %34 = vector.broadcast %cst_20 : f32 to vector<8x1xf32>
    %35 = arith.addf %33, %34 : vector<8x1xf32>
    %36 = tpu.reciprocal %35 {approx = true} : vector<8x1xf32> -> vector<8x1xf32>
    %37 = vector.broadcast %36 : vector<8x1xf32> to vector<8x32xf32>
    %38 = arith.mulf %29, %37 : vector<8x32xf32>
    %39 = arith.truncf %38 : vector<8x32xf32> to vector<8x32xbf16>
    %c0_21 = arith.constant 0 : index
    %c0_22 = arith.constant 0 : index
    %c0_23 = arith.constant 0 : index
    %40 = vector.load %arg8[%c0_21, %c0_22, %c0_23] : memref<2x8x32xbf16, #tpu.memory_space<vmem>>, vector<1x8x32xbf16>
    %41 = vector.shape_cast %40 : vector<1x8x32xbf16> to vector<8x32xbf16>
    %42 = vector.shape_cast %39 : vector<8x32xbf16> to vector<1x8x32xbf16>
    tpu.vector_store %arg8[%c0_21, %c0_22, %c0_23], %42 {strides = array<i32>} : memref<2x8x32xbf16, #tpu.memory_space<vmem>>, vector<1x8x32xbf16>,
    %c0_24 = arith.constant 0 : index
    %c1 = arith.constant 1 : index
    %c0_25 = arith.constant 0 : index
    %43 = vector.load %arg1[%c0_24, %c1, %c0_25] : memref<8x2x32xf32, #tpu.memory_space<vmem>>, vector<8x1x32xf32>
    %44 = vector.shape_cast %43 : vector<8x1x32xf32> to vector<8x32xf32>
    %c1_26 = arith.constant 1 : index
    %c0_27 = arith.constant 0 : index
    %c0_28 = arith.constant 0 : index
    %45 = vector.load %arg6[%c1_26, %c0_27, %c0_28] : memref<2x8x32xf32, #tpu.memory_space<vmem>>, vector<1x8x32xf32>
    %46 = vector.shape_cast %45 : vector<1x8x32xf32> to vector<8x32xf32>
    %47 = vector.shape_cast %44 : vector<8x32xf32> to vector<1x8x32xf32>
    tpu.vector_store %arg6[%c1_26, %c0_27, %c0_28], %47 {strides = array<i32>} : memref<2x8x32xf32, #tpu.memory_space<vmem>>, vector<1x8x32xf32>,
    %48 = arith.truncf %44 : vector<8x32xf32> to vector<8x32xbf16>
    %c0_29 = arith.constant 0 : index
    %c0_30 = arith.constant 0 : index
    %49 = vector.load %arg2[%c0_29, %c0_30] : memref<32x32xbf16, #tpu.memory_space<vmem>>, vector<32x32xbf16>
    %cst_31 = arith.constant dense<0.000000e+00> : vector<8x32xf32>
    %50 = tpu.matmul %48, %49, %cst_31 {dimension_numbers = #tpu.dot_dimension_numbers<[1], [0], [0], [1], [0, 0, 1, 1], [], []>} : vector<8x32xbf16>, vector<32x32xbf16>, vector<8x32xf32> -> vector<8x32xf32>
    %c0_32 = arith.constant 0 : index
    %c0_33 = arith.constant 0 : index
    %51 = vector.load %arg3[%c0_32, %c0_33] : memref<1x32xf32, #tpu.memory_space<vmem>>, vector<1x32xf32>
    %52 = vector.broadcast %51 : vector<1x32xf32> to vector<8x32xf32>
    %53 = arith.addf %50, %52 : vector<8x32xf32>
    %54 = arith.mulf %53, %53 : vector<8x32xf32>
    %cst_34 = arith.constant dense<0.000000e+00> : vector<8xf32>
    %55 = vector.multi_reduction <add>, %54, %cst_34 [1] : vector<8x32xf32> to vector<8xf32>
    %56 = vector.shape_cast %55 : vector<8xf32> to vector<8x1xf32>
    %57 = math.sqrt %56 : vector<8x1xf32>
    %cst_35 = arith.constant 9.99999993E-9 : f32
    %58 = vector.broadcast %cst_35 : f32 to vector<8x1xf32>
    %59 = arith.addf %57, %58 : vector<8x1xf32>
    %60 = tpu.reciprocal %59 {approx = true} : vector<8x1xf32> -> vector<8x1xf32>
    %61 = vector.broadcast %60 : vector<8x1xf32> to vector<8x32xf32>
    %62 = arith.mulf %53, %61 : vector<8x32xf32>
    %63 = arith.truncf %62 : vector<8x32xf32> to vector<8x32xbf16>
    %c1_36 = arith.constant 1 : index
    %c0_37 = arith.constant 0 : index
    %c0_38 = arith.constant 0 : index
    %64 = vector.load %arg7[%c1_36, %c0_37, %c0_38] : memref<2x8x32xbf16, #tpu.memory_space<vmem>>, vector<1x8x32xbf16>
    %65 = vector.shape_cast %64 : vector<1x8x32xbf16> to vector<8x32xbf16>
    %66 = vector.shape_cast %63 : vector<8x32xbf16> to vector<1x8x32xbf16>
    tpu.vector_store %arg7[%c1_36, %c0_37, %c0_38], %66 {strides = array<i32>} : memref<2x8x32xbf16, #tpu.memory_space<vmem>>, vector<1x8x32xbf16>,
    %67 = arith.truncf %44 : vector<8x32xf32> to vector<8x32xbf16>
    %c0_39 = arith.constant 0 : index
    %c0_40 = arith.constant 0 : index
    %68 = vector.load %arg4[%c0_39, %c0_40] : memref<32x32xbf16, #tpu.memory_space<vmem>>, vector<32x32xbf16>
    %cst_41 = arith.constant dense<0.000000e+00> : vector<8x32xf32>
    %69 = tpu.matmul %67, %68, %cst_41 {dimension_numbers = #tpu.dot_dimension_numbers<[1], [0], [0], [1], [0, 0, 1, 1], [], []>} : vector<8x32xbf16>, vector<32x32xbf16>, vector<8x32xf32> -> vector<8x32xf32>
    %c0_42 = arith.constant 0 : index
    %c0_43 = arith.constant 0 : index
    %70 = vector.load %arg5[%c0_42, %c0_43] : memref<1x32xf32, #tpu.memory_space<vmem>>, vector<1x32xf32>
    %71 = vector.broadcast %70 : vector<1x32xf32> to vector<8x32xf32>
    %72 = arith.addf %69, %71 : vector<8x32xf32>
    %73 = arith.mulf %72, %72 : vector<8x32xf32>
    %cst_44 = arith.constant dense<0.000000e+00> : vector<8xf32>
    %74 = vector.multi_reduction <add>, %73, %cst_44 [1] : vector<8x32xf32> to vector<8xf32>
    %75 = vector.shape_cast %74 : vector<8xf32> to vector<8x1xf32>
    %76 = math.sqrt %75 : vector<8x1xf32>
    %cst_45 = arith.constant 9.99999993E-9 : f32
    %77 = vector.broadcast %cst_45 : f32 to vector<8x1xf32>
    %78 = arith.addf %76, %77 : vector<8x1xf32>
    %79 = tpu.reciprocal %78 {approx = true} : vector<8x1xf32> -> vector<8x1xf32>
    %80 = vector.broadcast %79 : vector<8x1xf32> to vector<8x32xf32>
    %81 = arith.mulf %72, %80 : vector<8x32xf32>
    %82 = arith.truncf %81 : vector<8x32xf32> to vector<8x32xbf16>
    %c1_46 = arith.constant 1 : index
    %c0_47 = arith.constant 0 : index
    %c0_48 = arith.constant 0 : index
    %83 = vector.load %arg8[%c1_46, %c0_47, %c0_48] : memref<2x8x32xbf16, #tpu.memory_space<vmem>>, vector<1x8x32xbf16>
    %84 = vector.shape_cast %83 : vector<1x8x32xbf16> to vector<8x32xbf16>
    %85 = vector.shape_cast %82 : vector<8x32xbf16> to vector<1x8x32xbf16>
    tpu.vector_store %arg8[%c1_46, %c0_47, %c0_48], %85 {strides = array<i32>} : memref<2x8x32xbf16, #tpu.memory_space<vmem>>, vector<1x8x32xbf16>,
    return
  }
  func.func @transform_0(%arg0: i32) -> (i32, i32, i32) {
    %c0_i32 = arith.constant 0 : i32
    %c0_i32_0 = arith.constant 0 : i32
    %c0_i32_1 = arith.constant 0 : i32
    return %arg0, %c0_i32, %c0_i32_0 : i32, i32, i32
  }
  func.func @transform_1(%arg0: i32) -> (i32, i32) {
    %c0_i32 = arith.constant 0 : i32
    %c0_i32_0 = arith.constant 0 : i32
    %c0_i32_1 = arith.constant 0 : i32
    return %c0_i32, %c0_i32_0 : i32, i32
  }
  func.func @transform_2(%arg0: i32) -> (i32, i32) {
    %c0_i32 = arith.constant 0 : i32
    %c0_i32_0 = arith.constant 0 : i32
    %c0_i32_1 = arith.constant 0 : i32
    return %c0_i32, %c0_i32_0 : i32, i32
  }
  func.func @transform_3(%arg0: i32) -> (i32, i32) {
    %c0_i32 = arith.constant 0 : i32
    %c0_i32_0 = arith.constant 0 : i32
    %c0_i32_1 = arith.constant 0 : i32
    return %c0_i32, %c0_i32_0 : i32, i32
  }
  func.func @transform_4(%arg0: i32) -> (i32, i32) {
    %c0_i32 = arith.constant 0 : i32
    %c0_i32_0 = arith.constant 0 : i32
    %c0_i32_1 = arith.constant 0 : i32
    return %c0_i32, %c0_i32_0 : i32, i32
  }
  func.func @transform_5(%arg0: i32) -> (i32, i32, i32) {
    %c0_i32 = arith.constant 0 : i32
    %c0_i32_0 = arith.constant 0 : i32
    %c0_i32_1 = arith.constant 0 : i32
    return %c0_i32, %arg0, %c0_i32_0 : i32, i32, i32
  }
  func.func @transform_6(%arg0: i32) -> (i32, i32, i32) {
    %c0_i32 = arith.constant 0 : i32
    %c0_i32_0 = arith.constant 0 : i32
    %c0_i32_1 = arith.constant 0 : i32
    return %c0_i32, %arg0, %c0_i32_0 : i32, i32, i32
  }
  func.func @transform_7(%arg0: i32) -> (i32, i32, i32) {
    %c0_i32 = arith.constant 0 : i32
    %c0_i32_0 = arith.constant 0 : i32
    %c0_i32_1 = arith.constant 0 : i32
    return %c0_i32, %arg0, %c0_i32_0 : i32, i32, i32
  }
}

</mosaic_0001>

<llo_original>
// kernel: tpu_custom_call.1
$region0: #{tpu_custom_call.1}
  #allocation0 [shape = 'u32[]', space=smem, size = 0x4, offset = 0x4, fixed_abs, tag = 'smem constant byte address 0x4 - core index']
  #allocation1 [shape = 'u32[144,128]{1,0:T(1,128)}', space=vmem, size = 0x12000, scoped, tag = 'internal scratch']
  %s0 = inlined_call_operand.hbm [shape: f32[8,2,32], index: 0, kind: input, shape index: {}]
  %s1 = inlined_call_operand.hbm [shape: bf16[32,32], index: 1, kind: input, shape index: {}]
  %s2 = inlined_call_operand.vmem [shape: f32[1,32], index: 2, kind: input, shape index: {}]
  %s3 = inlined_call_operand.hbm [shape: bf16[32,32], index: 3, kind: input, shape index: {}]
  %s4 = inlined_call_operand.vmem [shape: f32[1,32], index: 4, kind: input, shape index: {}]
  %s5 = inlined_call_operand.hbm [shape: f32[2,8,32], index: 5, kind: output, shape index: {0}]
  %s6 = inlined_call_operand.hbm [shape: bf16[2,8,32], index: 6, kind: output, shape index: {1}]
  %s7 = inlined_call_operand.hbm [shape: bf16[2,8,32], index: 7, kind: output, shape index: {2}]
  %8 = xla_tuple %s5, %s6, %s7
  %s9 = sld [smem:[#allocation0]]
  $region58: #{tpu_custom_call.1} parent=0
    _
  %s11 = ssub.s32 1, %s9
  %s12 = scalar_select 0, %s11, %s9
  $region1: #{tpu_custom_call.1} parent=0
    #allocation2 [shape = 'u8[8192]{0}', space=vmem, size = 0x2000, scoped, tag = 'input window, operand 0, single buffered']
    #allocation3 [shape = 's32[1]{0}', space=sflag, size = 0x4, scoped, tag = 'scoped memory for tpu_custom_call.1']
    #allocation4 [shape = 's32[1]{0}', space=sflag, size = 0x4, scoped, tag = 'scoped memory for tpu_custom_call.1']
    #allocation5 [shape = 'u8[8192]{0}', space=vmem, size = 0x2000, scoped, tag = 'input window, operand 1, single buffered']
    #allocation6 [shape = 's32[1]{0}', space=sflag, size = 0x4, scoped, tag = 'scoped memory for tpu_custom_call.1']
    #allocation7 [shape = 'u8[8192]{0}', space=vmem, size = 0x2000, scoped, tag = 'input window, operand 3, single buffered']
    #allocation8 [shape = 'u8[8192]{0}', space=vmem, size = 0x2000, scoped, tag = 'output window, operand 0, single buffered']
    #allocation9 [shape = 'u8[4096]{0}', space=vmem, size = 0x1000, scoped, tag = 'output window, operand 1, single buffered']
    #allocation10 [shape = 's32[1]{0}', space=sflag, size = 0x4, scoped, tag = 'scoped memory for tpu_custom_call.1']
    #allocation11 [shape = 'u8[4096]{0}', space=vmem, size = 0x1000, scoped, tag = 'output window, operand 2, single buffered']
    %13 = vsyncpa [#allocation3], 0
    %14 = vsyncpa [#allocation6], 0
    %15 = vsyncpa [#allocation4], 0
    %16 = vsyncpa [#allocation10], 0
    // Predicated region
    $region2: #{tpu_custom_call.1} parent=1 // pred_check
      _
    $region3: #{tpu_custom_call.1} parent=1 // pred_check_branch
      %18 = sbr.rel (0) target = $region5
    $region4: #{tpu_custom_call.1} parent=1 // pred_region
      %s20 = ssub.s32 256, 256
      %21 = vsyncadd [#allocation3], %s20
      %s22 = sshll.u32 [#allocation2], 4
      %s23 = int_to_ptr.vmem [resolvable:$true] %s22
      %28 = dma.hbm_to_vmem [thread:$0]  %s0, 256, %s23, [#allocation3], 32, 32, 2
    $region5: #{tpu_custom_call.1} parent=1 // pred_fallthru
      _
    // Predicated region
    $region6: #{tpu_custom_call.1} parent=1 // pred_check
      _
    $region7: #{tpu_custom_call.1} parent=1 // pred_check_branch
      %30 = sbr.rel (0) target = $region9
    $region8: #{tpu_custom_call.1} parent=1 // pred_region
      %s32 = ssub.s32 256, 256
      %33 = vsyncadd [#allocation6], %s32
      %s34 = sshll.u32 [#allocation5], 4
      %s35 = int_to_ptr.vmem [resolvable:$true] %s34
      %40 = dma.hbm_to_vmem [thread:$0]  %s1, 256, %s35, [#allocation6], 64, 64, 4
    $region9: #{tpu_custom_call.1} parent=1 // pred_fallthru
      _
    // Predicated region
    $region10: #{tpu_custom_call.1} parent=1 // pred_check
      _
    $region11: #{tpu_custom_call.1} parent=1 // pred_check_branch
      %42 = sbr.rel (0) target = $region13
    $region12: #{tpu_custom_call.1} parent=1 // pred_region
      _
    $region13: #{tpu_custom_call.1} parent=1 // pred_fallthru
      _
    // Predicated region
    $region14: #{tpu_custom_call.1} parent=1 // pred_check
      _
    $region15: #{tpu_custom_call.1} parent=1 // pred_check_branch
      %44 = sbr.rel (0) target = $region17
    $region16: #{tpu_custom_call.1} parent=1 // pred_region
      %s46 = ssub.s32 256, 256
      %47 = vsyncadd [#allocation6], %s46
      %s48 = sshll.u32 [#allocation7], 4
      %s49 = int_to_ptr.vmem [resolvable:$true] %s48
      %54 = dma.hbm_to_vmem [thread:$0]  %s3, 256, %s49, [#allocation6], 64, 64, 4
    $region17: #{tpu_custom_call.1} parent=1 // pred_fallthru
      _
    // Predicated region
    $region18: #{tpu_custom_call.1} parent=1 // pred_check
      _
    $region19: #{tpu_custom_call.1} parent=1 // pred_check_branch
      %56 = sbr.rel (0) target = $region21
    $region20: #{tpu_custom_call.1} parent=1 // pred_region
      _
    $region21: #{tpu_custom_call.1} parent=1 // pred_fallthru
      _
    // Predicated region
    $region22: #{tpu_custom_call.1} parent=1 // pred_check
      _
    $region23: #{tpu_custom_call.1} parent=1 // pred_check_branch
      %58 = sbr.rel (0) target = $region25
    $region24: #{tpu_custom_call.1} parent=1 // pred_region
      %59 = dma.done [#allocation3], 256
    $region25: #{tpu_custom_call.1} parent=1 // pred_fallthru
      _
    // Predicated region
    $region26: #{tpu_custom_call.1} parent=1 // pred_check
      _
    $region27: #{tpu_custom_call.1} parent=1 // pred_check_branch
      %61 = sbr.rel (0) target = $region29
    $region28: #{tpu_custom_call.1} parent=1 // pred_region
      %62 = dma.done [#allocation6], 256
    $region29: #{tpu_custom_call.1} parent=1 // pred_fallthru
      _
    // Predicated region
    $region30: #{tpu_custom_call.1} parent=1 // pred_check
      _
    $region31: #{tpu_custom_call.1} parent=1 // pred_check_branch
      %64 = sbr.rel (0) target = $region33
    $region32: #{tpu_custom_call.1} parent=1 // pred_region
      %65 = dma.done [#allocation6], 256
    $region33: #{tpu_custom_call.1} parent=1 // pred_fallthru
      _
    %v67 = vld [vmem:[#allocation2] sm:$0x1]
    %v68 = vld [vmem:[#allocation2 + $0x2] sm:$0x1]
    %v69 = vld [vmem:[#allocation2 + $0x4] sm:$0x1]
    %v70 = vld [vmem:[#allocation2 + $0x6] sm:$0x1]
    %v71 = vld [vmem:[#allocation2 + $0x8] sm:$0x1]
    %v72 = vld [vmem:[#allocation2 + $0xa] sm:$0x1]
    %v73 = vld [vmem:[#allocation2 + $0xc] sm:$0x1]
    %v74 = vld [vmem:[#allocation2 + $0xe] sm:$0x1]
    %v83 = vrot.slane %v68, 7
    %vm84 = vcmask 1041409
    %v85 = vsel %vm84, %v83, %v67
    %v86 = vrot.slane %v69, 6
    %vm87 = vcmask 1042434
    %v88 = vsel %vm87, %v86, %v85
    %v89 = vrot.slane %v70, 5
    %vm90 = vcmask 1043459
    %v91 = vsel %vm90, %v89, %v88
    %v92 = vrot.slane %v71, 4
    %vm93 = vcmask 1044484
    %v94 = vsel %vm93, %v92, %v91
    %v95 = vrot.slane %v72, 3
    %vm96 = vcmask 1045509
    %v97 = vsel %vm96, %v95, %v94
    %v98 = vrot.slane %v73, 2
    %vm99 = vcmask 1046534
    %v100 = vsel %vm99, %v98, %v97
    %v101 = vrot.slane %v74, 1
    %vm102 = vcmask 1047559
    %v103 = vsel %vm102, %v101, %v100
    %vm105 = vcmask 261120
    %106 = vst.msk [vmem:[#allocation8] sm:$0xff] %vm105, %v103
    %v107 = vpack.c.bf16 %v67, %v67
    %v108 = vpack.c.bf16 %v68, %v68
    %v109 = vpack.c.bf16 %v69, %v69
    %v110 = vpack.c.bf16 %v70, %v70
    %v111 = vpack.c.bf16 %v71, %v71
    %v112 = vpack.c.bf16 %v72, %v72
    %v113 = vpack.c.bf16 %v73, %v73
    %v114 = vpack.c.bf16 %v74, %v74
    %v115 = vld [vmem:[#allocation5] sm:$0xf]
    %v116 = vld [vmem:[#allocation5 + $0x4] sm:$0xf]
    %v117 = vld [vmem:[#allocation5 + $0x8] sm:$0xf]
    %v118 = vld [vmem:[#allocation5 + $0xc] sm:$0xf]
    %v119 = vld [vmem:[%s2] sm:$0x1]
    %v121 = vlaneseq
    %v122 = vshrl.u32 %v121, 7
    %v123 = vsub.s32 0, %v122
    %v124 = vrot.slane %v119, %v123
    %v134 = vunpack.c.l.b16 %v107
    %v135 = vunpack.c.l.b16 %v108
    %v136 = vunpack.c.l.b16 %v109
    %v137 = vunpack.c.l.b16 %v110
    %v138 = vunpack.c.l.b16 %v111
    %v139 = vunpack.c.l.b16 %v112
    %v140 = vunpack.c.l.b16 %v113
    %v141 = vunpack.c.l.b16 %v114
    %v142 = vrot.slane %v135, 7
    %v143 = vsel %vm84, %v142, %v134
    %v144 = vrot.slane %v136, 6
    %v145 = vsel %vm87, %v144, %v143
    %v146 = vrot.slane %v137, 5
    %v147 = vsel %vm90, %v146, %v145
    %v148 = vrot.slane %v138, 4
    %v149 = vsel %vm93, %v148, %v147
    %v150 = vrot.slane %v139, 3
    %v151 = vsel %vm96, %v150, %v149
    %v152 = vrot.slane %v140, 2
    %v153 = vsel %vm99, %v152, %v151
    %v154 = vrot.slane %v141, 1
    %v155 = vsel %vm102, %v154, %v153
    %v156 = vpack.c.b16 %v155, %v155
    %v161 = vunpack.c.l.b16 %v115
    %v162 = vunpack.c.l.b16 %v116
    %v163 = vunpack.c.l.b16 %v117
    %v164 = vunpack.c.l.b16 %v118
    %v165 = vpack.c.b16 %v162, %v161
    %v166 = vpack.c.b16 %v164, %v163
    %v170 = vsel %vm105, %v156, 0
    %172 = vmatprep.subr.bf16.mxu0 0
    %173 = vmatpush1.bf16.msra.mxu0 %v165
    %174 = vmatprep.subr.bf16.mxu0 0
    %175 = vmatpush1.bf16.msra.mxu0 %v166
    %176 = vmatprep.subr.bf16.mxu0 0
    %177 = vmatpush1.bf16.msra.mxu0 0
    %178 = vmatprep.subr.bf16.mxu0 0
    %179 = vmatpush1.bf16.msra.mxu0 0
    %180 = vmatprep.subr.bf16.mxu0 0
    %181 = vmatpush1.bf16.msra.mxu0 0
    %182 = vmatprep.subr.bf16.mxu0 0
    %183 = vmatpush1.bf16.msra.mxu0 0
    %184 = vmatprep.subr.bf16.mxu0 0
    %185 = vmatpush1.bf16.msra.mxu0 0
    %186 = vmatprep.subr.bf16.mxu0 0
    %187 = vmatpush1.bf16.msra.mxu0 0
    %188 = vmatprep.subr.bf16.mxu0 0
    %189 = vmatpush1.bf16.msra.mxu0 0
    %190 = vmatprep.subr.bf16.mxu0 0
    %191 = vmatpush1.bf16.msra.mxu0 0
    %192 = vmatprep.subr.bf16.mxu0 0
    %193 = vmatpush1.bf16.msra.mxu0 0
    %194 = vmatprep.subr.bf16.mxu0 0
    %195 = vmatpush1.bf16.msra.mxu0 0
    %196 = vmatprep.subr.bf16.mxu0 0
    %197 = vmatpush1.bf16.msra.mxu0 0
    %198 = vmatprep.subr.bf16.mxu0 0
    %199 = vmatpush1.bf16.msra.mxu0 0
    %200 = vmatprep.subr.bf16.mxu0 0
    %201 = vmatpush1.bf16.msra.mxu0 0
    %202 = vmatprep.subr.bf16.mxu0 0
    %203 = vmatpush1.bf16.msra.mxu0 0
    %204 = vmatprep.mubr.bf16.mxu0 0
    %205 = vmatmul.mubr.bf16.gmra.mrb[0].mxu0 %v170
    %v206 = vpop.f32.mrb[0].mxu0
    %v207 = vadd.f32 %v124, %v206
    %v208 = vpop.f32.mrb[0].mxu0
    %v209 = vpop.f32.mrb[0].mxu0
    %v210 = vpop.f32.mrb[0].mxu0
    %211 = vdwg.mxu0
    %v212 = vmul.f32 %v207, %v207
    %v213 = vsel %vm105, %v212, 0.0
    %214 = vadd.xlane.f32.xlu0 %v213
    %v215 = vpop.xlane.xlu0 %214
    %v216 = vrsqrt.pop %v215
    %v217 = vmul.f32 %v215, %v216
    %vm218 = vcmp.eq.f32.partialorder %v215, inf
    %v219 = vsel %vm218, %v215, %v217
    %vm220 = vcmp.eq.f32.partialorder %v215, 0.0
    %v221 = vand.u32 %v215, 2147483648
    %v222 = vsel %vm220, %v221, %v219
    %v223 = vadd.f32 %v222, 1e-08
    %v224 = vrcp.pop %v223
    %v225 = vmul.f32 %v207, %v224
    %v226 = vpack.c.bf16 %v225, %v225
    %vm227 = vcmask 257024
    %228 = vst.msk [vmem:[#allocation9] sm:$0xf] %vm227, %v226
    %v229 = vld [vmem:[#allocation7] sm:$0xf]
    %v230 = vld [vmem:[#allocation7 + $0x4] sm:$0xf]
    %v231 = vld [vmem:[#allocation7 + $0x8] sm:$0xf]
    %v232 = vld [vmem:[#allocation7 + $0xc] sm:$0xf]
    %v233 = vld [vmem:[%s4] sm:$0x1]
    %v235 = vlaneseq
    %v236 = vshrl.u32 %v235, 7
    %v237 = vsub.s32 0, %v236
    %v238 = vrot.slane %v233, %v237
    %v244 = vunpack.c.l.b16 %v229
    %v245 = vunpack.c.l.b16 %v230
    %v246 = vunpack.c.l.b16 %v231
    %v247 = vunpack.c.l.b16 %v232
    %v248 = vpack.c.b16 %v245, %v244
    %v249 = vpack.c.b16 %v247, %v246
    %252 = vmatprep.subr.bf16.mxu0 0
    %253 = vmatpush1.bf16.msra.mxu0 %v248
    %254 = vmatprep.subr.bf16.mxu0 0
    %255 = vmatpush1.bf16.msra.mxu0 %v249
    %256 = vmatprep.subr.bf16.mxu0 0
    %257 = vmatpush1.bf16.msra.mxu0 0
    %258 = vmatprep.subr.bf16.mxu0 0
    %259 = vmatpush1.bf16.msra.mxu0 0
    %260 = vmatprep.subr.bf16.mxu0 0
    %261 = vmatpush1.bf16.msra.mxu0 0
    %262 = vmatprep.subr.bf16.mxu0 0
    %263 = vmatpush1.bf16.msra.mxu0 0
    %264 = vmatprep.subr.bf16.mxu0 0
    %265 = vmatpush1.bf16.msra.mxu0 0
    %266 = vmatprep.subr.bf16.mxu0 0
    %267 = vmatpush1.bf16.msra.mxu0 0
    %268 = vmatprep.subr.bf16.mxu0 0
    %269 = vmatpush1.bf16.msra.mxu0 0
    %270 = vmatprep.subr.bf16.mxu0 0
    %271 = vmatpush1.bf16.msra.mxu0 0
    %272 = vmatprep.subr.bf16.mxu0 0
    %273 = vmatpush1.bf16.msra.mxu0 0
    %274 = vmatprep.subr.bf16.mxu0 0
    %275 = vmatpush1.bf16.msra.mxu0 0
    %276 = vmatprep.subr.bf16.mxu0 0
    %277 = vmatpush1.bf16.msra.mxu0 0
    %278 = vmatprep.subr.bf16.mxu0 0
    %279 = vmatpush1.bf16.msra.mxu0 0
    %280 = vmatprep.subr.bf16.mxu0 0
    %281 = vmatpush1.bf16.msra.mxu0 0
    %282 = vmatprep.subr.bf16.mxu0 0
    %283 = vmatpush1.bf16.msra.mxu0 0
    %284 = vmatprep.mubr.bf16.mxu0 0
    %285 = vmatmul.mubr.bf16.gmra.mrb[0].mxu0 %v170
    %v286 = vpop.f32.mrb[0].mxu0
    %v287 = vadd.f32 %v238, %v286
    %v288 = vpop.f32.mrb[0].mxu0
    %v289 = vpop.f32.mrb[0].mxu0
    %v290 = vpop.f32.mrb[0].mxu0
    %291 = vdwg.mxu0
    %v292 = vmul.f32 %v287, %v287
    %v293 = vsel %vm105, %v292, 0.0
    %294 = vadd.xlane.f32.xlu0 %v293
    %v295 = vpop.xlane.xlu0 %294
    %v296 = vrsqrt.pop %v295
    %v297 = vmul.f32 %v295, %v296
    %vm298 = vcmp.eq.f32.partialorder %v295, inf
    %v299 = vsel %vm298, %v295, %v297
    %vm300 = vcmp.eq.f32.partialorder %v295, 0.0
    %v301 = vand.u32 %v295, 2147483648
    %v302 = vsel %vm300, %v301, %v299
    %v303 = vadd.f32 %v302, 1e-08
    %v304 = vrcp.pop %v303
    %v305 = vmul.f32 %v287, %v304
    %v306 = vpack.c.bf16 %v305, %v305
    %307 = vst.msk [vmem:[#allocation11] sm:$0xf] %vm227, %v306
    %v308 = vld [vmem:[#allocation2 + $0x1] sm:$0x1]
    %v309 = vld [vmem:[#allocation2 + $0x3] sm:$0x1]
    %v310 = vld [vmem:[#allocation2 + $0x5] sm:$0x1]
    %v311 = vld [vmem:[#allocation2 + $0x7] sm:$0x1]
    %v312 = vld [vmem:[#allocation2 + $0x9] sm:$0x1]
    %v313 = vld [vmem:[#allocation2 + $0xb] sm:$0x1]
    %v314 = vld [vmem:[#allocation2 + $0xd] sm:$0x1]
    %v315 = vld [vmem:[#allocation2 + $0xf] sm:$0x1]
    %v324 = vrot.slane %v309, 7
    %v325 = vsel %vm84, %v324, %v308
    %v326 = vrot.slane %v310, 6
    %v327 = vsel %vm87, %v326, %v325
    %v328 = vrot.slane %v311, 5
    %v329 = vsel %vm90, %v328, %v327
    %v330 = vrot.slane %v312, 4
    %v331 = vsel %vm93, %v330, %v329
    %v332 = vrot.slane %v313, 3
    %v333 = vsel %vm96, %v332, %v331
    %v334 = vrot.slane %v314, 2
    %v335 = vsel %vm99, %v334, %v333
    %v336 = vrot.slane %v315, 1
    %v337 = vsel %vm102, %v336, %v335
    %s339 = scalar_lea.vmem [#allocation8], 8
    %340 = vst.msk [vmem:[%s339] sm:$0xff] %vm105, %v337
    %v341 = vpack.c.bf16 %v308, %v308
    %v342 = vpack.c.bf16 %v309, %v309
    %v343 = vpack.c.bf16 %v310, %v310
    %v344 = vpack.c.bf16 %v311, %v311
    %v345 = vpack.c.bf16 %v312, %v312
    %v346 = vpack.c.bf16 %v313, %v313
    %v347 = vpack.c.bf16 %v314, %v314
    %v348 = vpack.c.bf16 %v315, %v315
    %v349 = vld [vmem:[#allocation5] sm:$0xf]
    %v350 = vld [vmem:[#allocation5 + $0x4] sm:$0xf]
    %v351 = vld [vmem:[#allocation5 + $0x8] sm:$0xf]
    %v352 = vld [vmem:[#allocation5 + $0xc] sm:$0xf]
    %v353 = vld [vmem:[%s2] sm:$0x1]
    %v355 = vlaneseq
    %v356 = vshrl.u32 %v355, 7
    %v357 = vsub.s32 0, %v356
    %v358 = vrot.slane %v353, %v357
    %v368 = vunpack.c.l.b16 %v341
    %v369 = vunpack.c.l.b16 %v342
    %v370 = vunpack.c.l.b16 %v343
    %v371 = vunpack.c.l.b16 %v344
    %v372 = vunpack.c.l.b16 %v345
    %v373 = vunpack.c.l.b16 %v346
    %v374 = vunpack.c.l.b16 %v347
    %v375 = vunpack.c.l.b16 %v348
    %v376 = vrot.slane %v369, 7
    %v377 = vsel %vm84, %v376, %v368
    %v378 = vrot.slane %v370, 6
    %v379 = vsel %vm87, %v378, %v377
    %v380 = vrot.slane %v371, 5
    %v381 = vsel %vm90, %v380, %v379
    %v382 = vrot.slane %v372, 4
    %v383 = vsel %vm93, %v382, %v381
    %v384 = vrot.slane %v373, 3
    %v385 = vsel %vm96, %v384, %v383
    %v386 = vrot.slane %v374, 2
    %v387 = vsel %vm99, %v386, %v385
    %v388 = vrot.slane %v375, 1
    %v389 = vsel %vm102, %v388, %v387
    %v390 = vpack.c.b16 %v389, %v389
    %v395 = vunpack.c.l.b16 %v349
    %v396 = vunpack.c.l.b16 %v350
    %v397 = vunpack.c.l.b16 %v351
    %v398 = vunpack.c.l.b16 %v352
    %v399 = vpack.c.b16 %v396, %v395
    %v400 = vpack.c.b16 %v398, %v397
    %v404 = vsel %vm105, %v390, 0
    %406 = vmatprep.subr.bf16.mxu0 0
    %407 = vmatpush1.bf16.msra.mxu0 %v399
    %408 = vmatprep.subr.bf16.mxu0 0
    %409 = vmatpush1.bf16.msra.mxu0 %v400
    %410 = vmatprep.subr.bf16.mxu0 0
    %411 = vmatpush1.bf16.msra.mxu0 0
    %412 = vmatprep.subr.bf16.mxu0 0
    %413 = vmatpush1.bf16.msra.mxu0 0
    %414 = vmatprep.subr.bf16.mxu0 0
    %415 = vmatpush1.bf16.msra.mxu0 0
    %416 = vmatprep.subr.bf16.mxu0 0
    %417 = vmatpush1.bf16.msra.mxu0 0
    %418 = vmatprep.subr.bf16.mxu0 0
    %419 = vmatpush1.bf16.msra.mxu0 0
    %420 = vmatprep.subr.bf16.mxu0 0
    %421 = vmatpush1.bf16.msra.mxu0 0
    %422 = vmatprep.subr.bf16.mxu0 0
    %423 = vmatpush1.bf16.msra.mxu0 0
    %424 = vmatprep.subr.bf16.mxu0 0
    %425 = vmatpush1.bf16.msra.mxu0 0
    %426 = vmatprep.subr.bf16.mxu0 0
    %427 = vmatpush1.bf16.msra.mxu0 0
    %428 = vmatprep.subr.bf16.mxu0 0
    %429 = vmatpush1.bf16.msra.mxu0 0
    %430 = vmatprep.subr.bf16.mxu0 0
    %431 = vmatpush1.bf16.msra.mxu0 0
    %432 = vmatprep.subr.bf16.mxu0 0
    %433 = vmatpush1.bf16.msra.mxu0 0
    %434 = vmatprep.subr.bf16.mxu0 0
    %435 = vmatpush1.bf16.msra.mxu0 0
    %436 = vmatprep.subr.bf16.mxu0 0
    %437 = vmatpush1.bf16.msra.mxu0 0
    %438 = vmatprep.mubr.bf16.mxu0 0
    %439 = vmatmul.mubr.bf16.gmra.mrb[0].mxu0 %v404
    %v440 = vpop.f32.mrb[0].mxu0
    %v441 = vadd.f32 %v358, %v440
    %v442 = vpop.f32.mrb[0].mxu0
    %v443 = vpop.f32.mrb[0].mxu0
    %v444 = vpop.f32.mrb[0].mxu0
    %445 = vdwg.mxu0
    %v446 = vmul.f32 %v441, %v441
    %v447 = vsel %vm105, %v446, 0.0
    %448 = vadd.xlane.f32.xlu0 %v447
    %v449 = vpop.xlane.xlu0 %448
    %v450 = vrsqrt.pop %v449
    %v451 = vmul.f32 %v449, %v450
    %vm452 = vcmp.eq.f32.partialorder %v449, inf
    %v453 = vsel %vm452, %v449, %v451
    %vm454 = vcmp.eq.f32.partialorder %v449, 0.0
    %v455 = vand.u32 %v449, 2147483648
    %v456 = vsel %vm454, %v455, %v453
    %v457 = vadd.f32 %v456, 1e-08
    %v458 = vrcp.pop %v457
    %v459 = vmul.f32 %v441, %v458
    %v460 = vpack.c.bf16 %v459, %v459
    %s461 = scalar_lea.vmem [#allocation9], 4
    %462 = vst.msk [vmem:[%s461] sm:$0xf] %vm227, %v460
    %v463 = vld [vmem:[#allocation7] sm:$0xf]
    %v464 = vld [vmem:[#allocation7 + $0x4] sm:$0xf]
    %v465 = vld [vmem:[#allocation7 + $0x8] sm:$0xf]
    %v466 = vld [vmem:[#allocation7 + $0xc] sm:$0xf]
    %v467 = vld [vmem:[%s4] sm:$0x1]
    %v469 = vlaneseq
    %v470 = vshrl.u32 %v469, 7
    %v471 = vsub.s32 0, %v470
    %v472 = vrot.slane %v467, %v471
    %v478 = vunpack.c.l.b16 %v463
    %v479 = vunpack.c.l.b16 %v464
    %v480 = vunpack.c.l.b16 %v465
    %v481 = vunpack.c.l.b16 %v466
    %v482 = vpack.c.b16 %v479, %v478
    %v483 = vpack.c.b16 %v481, %v480
    %486 = vmatprep.subr.bf16.mxu0 0
    %487 = vmatpush1.bf16.msra.mxu0 %v482
    %488 = vmatprep.subr.bf16.mxu0 0
    %489 = vmatpush1.bf16.msra.mxu0 %v483
    %490 = vmatprep.subr.bf16.mxu0 0
    %491 = vmatpush1.bf16.msra.mxu0 0
    %492 = vmatprep.subr.bf16.mxu0 0
    %493 = vmatpush1.bf16.msra.mxu0 0
    %494 = vmatprep.subr.bf16.mxu0 0
    %495 = vmatpush1.bf16.msra.mxu0 0
    %496 = vmatprep.subr.bf16.mxu0 0
    %497 = vmatpush1.bf16.msra.mxu0 0
    %498 = vmatprep.subr.bf16.mxu0 0
    %499 = vmatpush1.bf16.msra.mxu0 0
    %500 = vmatprep.subr.bf16.mxu0 0
    %501 = vmatpush1.bf16.msra.mxu0 0
    %502 = vmatprep.subr.bf16.mxu0 0
    %503 = vmatpush1.bf16.msra.mxu0 0
    %504 = vmatprep.subr.bf16.mxu0 0
    %505 = vmatpush1.bf16.msra.mxu0 0
    %506 = vmatprep.subr.bf16.mxu0 0
    %507 = vmatpush1.bf16.msra.mxu0 0
    %508 = vmatprep.subr.bf16.mxu0 0
    %509 = vmatpush1.bf16.msra.mxu0 0
    %510 = vmatprep.subr.bf16.mxu0 0
    %511 = vmatpush1.bf16.msra.mxu0 0
    %512 = vmatprep.subr.bf16.mxu0 0
    %513 = vmatpush1.bf16.msra.mxu0 0
    %514 = vmatprep.subr.bf16.mxu0 0
    %515 = vmatpush1.bf16.msra.mxu0 0
    %516 = vmatprep.subr.bf16.mxu0 0
    %517 = vmatpush1.bf16.msra.mxu0 0
    %518 = vmatprep.mubr.bf16.mxu0 0
    %519 = vmatmul.mubr.bf16.gmra.mrb[0].mxu0 %v404
    %v520 = vpop.f32.mrb[0].mxu0
    %v521 = vadd.f32 %v472, %v520
    %v522 = vpop.f32.mrb[0].mxu0
    %v523 = vpop.f32.mrb[0].mxu0
    %v524 = vpop.f32.mrb[0].mxu0
    %525 = vdwg.mxu0
    %v526 = vmul.f32 %v521, %v521
    %v527 = vsel %vm105, %v526, 0.0
    %528 = vadd.xlane.f32.xlu0 %v527
    %v529 = vpop.xlane.xlu0 %528
    %v530 = vrsqrt.pop %v529
    %v531 = vmul.f32 %v529, %v530
    %vm532 = vcmp.eq.f32.partialorder %v529, inf
    %v533 = vsel %vm532, %v529, %v531
    %vm534 = vcmp.eq.f32.partialorder %v529, 0.0
    %v535 = vand.u32 %v529, 2147483648
    %v536 = vsel %vm534, %v535, %v533
    %v537 = vadd.f32 %v536, 1e-08
    %v538 = vrcp.pop %v537
    %v539 = vmul.f32 %v521, %v538
    %v540 = vpack.c.bf16 %v539, %v539
    %s541 = scalar_lea.vmem [#allocation11], 4
    %542 = vst.msk [vmem:[%s541] sm:$0xf] %vm227, %v540
    // Predicated region
    $region34: #{tpu_custom_call.1} parent=1 // pred_check
      _
    $region35: #{tpu_custom_call.1} parent=1 // pred_check_branch
      %544 = sbr.rel (0) target = $region37
    $region36: #{tpu_custom_call.1} parent=1 // pred_region
      %s546 = ssub.s32 256, 256
      %547 = vsyncadd [#allocation4], %s546
      %s548 = sshll.u32 [#allocation8], 4
      %s549 = int_to_ptr.vmem [resolvable:$true] %s548
      %554 = dma.vmem_to_hbm [thread:$0]  %s549, 256, %s5, [#allocation4], 128, 128, 8
    $region37: #{tpu_custom_call.1} parent=1 // pred_fallthru
      _
    // Predicated region
    $region38: #{tpu_custom_call.1} parent=1 // pred_check
      _
    $region39: #{tpu_custom_call.1} parent=1 // pred_check_branch
      %556 = sbr.rel (0) target = $region41
    $region40: #{tpu_custom_call.1} parent=1 // pred_region
      %s558 = ssub.s32 128, 128
      %559 = vsyncadd [#allocation10], %s558
      %s560 = sshll.u32 [#allocation9], 4
      %s561 = int_to_ptr.vmem [resolvable:$true] %s560
      %566 = dma.vmem_to_hbm [thread:$0]  %s561, 128, %s6, [#allocation10], 64, 64, 4
    $region41: #{tpu_custom_call.1} parent=1 // pred_fallthru
      _
    // Predicated region
    $region42: #{tpu_custom_call.1} parent=1 // pred_check
      _
    $region43: #{tpu_custom_call.1} parent=1 // pred_check_branch
      %568 = sbr.rel (0) target = $region45
    $region44: #{tpu_custom_call.1} parent=1 // pred_region
      %s570 = ssub.s32 128, 128
      %571 = vsyncadd [#allocation10], %s570
      %s572 = sshll.u32 [#allocation11], 4
      %s573 = int_to_ptr.vmem [resolvable:$true] %s572
      %578 = dma.vmem_to_hbm [thread:$0]  %s573, 128, %s7, [#allocation10], 64, 64, 4
    $region45: #{tpu_custom_call.1} parent=1 // pred_fallthru
      _
    // Predicated region
    $region46: #{tpu_custom_call.1} parent=1 // pred_check
      _
    $region47: #{tpu_custom_call.1} parent=1 // pred_check_branch
      %580 = sbr.rel (0) target = $region49
    $region48: #{tpu_custom_call.1} parent=1 // pred_region
      %581 = dma.done [#allocation4], 256
    $region49: #{tpu_custom_call.1} parent=1 // pred_fallthru
      _
    // Predicated region
    $region50: #{tpu_custom_call.1} parent=1 // pred_check
      _
    $region51: #{tpu_custom_call.1} parent=1 // pred_check_branch
      %583 = sbr.rel (0) target = $region53
    $region52: #{tpu_custom_call.1} parent=1 // pred_region
      %584 = dma.done [#allocation10], 128
    $region53: #{tpu_custom_call.1} parent=1 // pred_fallthru
      _
    // Predicated region
    $region54: #{tpu_custom_call.1} parent=1 // pred_check
      _
    $region55: #{tpu_custom_call.1} parent=1 // pred_check_branch
      %586 = sbr.rel (0) target = $region57
    $region56: #{tpu_custom_call.1} parent=1 // pred_region
      %587 = dma.done [#allocation10], 128
    $region57: #{tpu_custom_call.1} parent=1 // pred_fallthru
      _
    %588 = vsyncpa [#allocation3], 1
    %589 = vsyncpa [#allocation6], 1
    %590 = vsyncpa [#allocation4], 1
    %591 = vsyncpa [#allocation10], 1

</llo_original>
